<compile_context>
chip_gen: v6e
topology: v6e:2x2x1
jax: 0.10.0
libtpu: 0.0.40
codegen_flags: <defaults>
</compile_context>

<pallas_src>
import functools
import math

import jax
import jax.numpy as jnp
from jax.experimental import pallas as pl
from jax.experimental.pallas import tpu as pltpu

DIM = 128            # embedding dim (lane axis)
ENTITY_COUNT = 16    # entity table has ENTITY_COUNT + 1 rows (last = padding)
RELATION_COUNT = 4   # relation table has RELATION_COUNT + 1 rows (last = padding)
BATCH = 8            # number of triplets per batch
MARGIN = 1.0


# ---------------------------------------------------------------------------
# Fused kernel: one-hot gather (MXU) + post-gather L2 norm + L1 dist + loss
# ---------------------------------------------------------------------------
def _fused_transw_kernel(margin, batch,
                         idx_ref,                                  # VMEM (2B,3) i32: [pos; neg]
                         ent_ref, rel_ref, etxt_ref, rtxt_ref,     # VMEM tables
                         out_ref):                                 # VMEM (B, DIM) f32 output slab
    two_b = 2 * batch
    e_rows = ent_ref.shape[0]     # ENTITY_COUNT + 1
    r_rows = rel_ref.shape[0]     # RELATION_COUNT + 1
    et_rows = etxt_ref.shape[0]   # ENTITY_COUNT
    rt_rows = rtxt_ref.shape[0]   # RELATION_COUNT

    idx = idx_ref[...]            # (2B, 3) int32
    h = idx[:, 0:1]               # (2B, 1)
    r = idx[:, 1:2]
    t = idx[:, 2:3]

    # --- Vectorized one-hot gathers: (2B, n_rows) @ (n_rows, D) on the MXU ---
    def onehot(col, n_rows):
        lane = jax.lax.broadcasted_iota(jnp.int32, (two_b, n_rows), 1)
        return (lane == col).astype(jnp.float32)

    def gather(oh, tab):
        return jnp.dot(oh, tab, preferred_element_type=jnp.float32)

    ent = ent_ref[...]
    rel = rel_ref[...]
    etxt = etxt_ref[...]
    rtxt = rtxt_ref[...]

    he = gather(onehot(h, e_rows), ent)      # raw entity rows for heads  (2B, D)
    te = gather(onehot(t, e_rows), ent)      # raw entity rows for tails  (2B, D)
    ht = gather(onehot(h, et_rows), etxt)    # head text embeddings       (2B, D)
    tt = gather(onehot(t, et_rows), etxt)    # tail text embeddings       (2B, D)
    rr = gather(onehot(r, r_rows), rel)      # relation embeddings        (2B, D)
    rt = gather(onehot(r, rt_rows), rtxt)    # relation text embeddings   (2B, D)

    # --- L2-normalize the gathered entity rows (== normalize-table-then-gather
    #     for indices < entity_count, which the triplet ranges guarantee) -----
    # NOTE: original PyTorch divides by the raw norm (no eps); the clamp only
    # guards an all-zero row (impossible with this init) against NaN.
    def l2_normalize(x):
        ssq = jnp.sum(x * x, axis=1, keepdims=True)
        return x * jax.lax.rsqrt(jnp.maximum(ssq, 1e-24))

    diff = l2_normalize(he) * ht + rr * rt - l2_normalize(te) * tt   # (2B, D)

    # --- L1 distance (p=1 norm over dim) + margin ranking loss ---------------
    dist = jnp.sum(jnp.abs(diff), axis=1, keepdims=True)             # (2B, 1)
    pos = dist[:batch]                                               # (B, 1)
    neg = dist[batch:]                                               # (B, 1)
    # MarginRankingLoss(x1=pos, x2=neg, y=-1, reduction='none')
    #   = max(0, -y*(x1 - x2) + margin) = max(0, pos - neg + margin)
    loss = jnp.maximum(pos - neg + margin, 0.0)                      # (B, 1)

    # Single lane-dense output slab: lane 0 = pos, lane 1 = neg, lane 2 = loss.
    lane = jax.lax.broadcasted_iota(jnp.int32, out_ref.shape, 1)     # (B, D)
    out_ref[...] = jnp.where(lane == 0, pos,
                    jnp.where(lane == 1, neg,
                     jnp.where(lane == 2, loss, 0.0)))


def _transw_pallas(entities_emb, relations_emb, ent_text_emb, rel_text_emb,
                   positive_triplets, negative_triplets):
    e_rows, d = entities_emb.shape
    r_rows, _ = relations_emb.shape
    et_rows, _ = ent_text_emb.shape
    rt_rows, _ = rel_text_emb.shape
    b = positive_triplets.shape[0]

    # Stack pos on top of neg -> one (2B,3) index block, one gather/reduce pass.
    idx = jnp.concatenate([positive_triplets, negative_triplets],
                          axis=0).astype(jnp.int32)                  # (2B, 3)

    kernel = functools.partial(_fused_transw_kernel, MARGIN, b)

    out = pl.pallas_call(
        kernel,
        out_shape=jax.ShapeDtypeStruct((b, d), jnp.float32),
        grid_spec=pl.GridSpec(
            grid=(1,),
            in_specs=[
                # (2B,3) equals the full array shape, so the (8,128) rule does
                # not apply to this block.
                pl.BlockSpec((2 * b, 3), lambda i: (0, 0)),
                pl.BlockSpec((e_rows, d), lambda i: (0, 0)),
                pl.BlockSpec((r_rows, d), lambda i: (0, 0)),
                pl.BlockSpec((et_rows, d), lambda i: (0, 0)),
                pl.BlockSpec((rt_rows, d), lambda i: (0, 0)),
            ],
            out_specs=pl.BlockSpec((b, d), lambda i: (0, 0)),
        ),
        compiler_params=pltpu.CompilerParams(
            dimension_semantics=("arbitrary",)),
    )(idx, entities_emb, relations_emb, ent_text_emb, rel_text_emb)

    pos_d = out[:, 0]
    neg_d = out[:, 1]
    loss = out[:, 2]
    return loss, pos_d, neg_d


@jax.jit
def transw_forward(entities_emb, relations_emb, ent_text_emb, rel_text_emb,
                   positive_triplets, negative_triplets):
    return _transw_pallas(entities_emb, relations_emb, ent_text_emb,
                          rel_text_emb, positive_triplets, negative_triplets)


# ---------------------------------------------------------------------------
# Deterministic parameter construction (mirrors TransW.__init__)
# ---------------------------------------------------------------------------
def init_params(key):
    k_ent, k_rel, k_etxt, k_rtxt = jax.random.split(key, 4)
    u = 6.0 / math.sqrt(DIM)

    # entity embedding table: uniform(-6/sqrt(d), 6/sqrt(d)), padding row last
    entities_emb = jax.random.uniform(
        k_ent, (ENTITY_COUNT + 1, DIM), minval=-u, maxval=u, dtype=jnp.float32)

    # relation embedding table: uniform init, then L1-normalize rows [:-1]
    relations_emb = jax.random.uniform(
        k_rel, (RELATION_COUNT + 1, DIM), minval=-u, maxval=u, dtype=jnp.float32)
    rel_l1 = jnp.sum(jnp.abs(relations_emb[:-1]), axis=1, keepdims=True)
    relations_emb = relations_emb.at[:-1].set(relations_emb[:-1] / rel_l1)

    # Stand-ins for mean-pooled LM token embeddings of entity/relation text.
    ent_text_emb = 0.02 * jax.random.normal(k_etxt, (ENTITY_COUNT, DIM),
                                            dtype=jnp.float32)
    rel_text_emb = 0.02 * jax.random.normal(k_rtxt, (RELATION_COUNT, DIM),
                                            dtype=jnp.float32)
    return entities_emb, relations_emb, ent_text_emb, rel_text_emb


if __name__ == "__main__":
    key = jax.random.PRNGKey(0)
    k_params, k_ph, k_pr, k_pt, k_nh, k_nr, k_nt = jax.random.split(key, 7)

    entities_emb, relations_emb, ent_text_emb, rel_text_emb = init_params(k_params)

    positive_triplets = jnp.stack([
        jax.random.randint(k_ph, (BATCH,), 0, ENTITY_COUNT),
        jax.random.randint(k_pr, (BATCH,), 0, RELATION_COUNT),
        jax.random.randint(k_pt, (BATCH,), 0, ENTITY_COUNT),
    ], axis=1).astype(jnp.int32)                        # (BATCH, 3)

    negative_triplets = jnp.stack([
        jax.random.randint(k_nh, (BATCH,), 0, ENTITY_COUNT),
        jax.random.randint(k_nr, (BATCH,), 0, RELATION_COUNT),
        jax.random.randint(k_nt, (BATCH,), 0, ENTITY_COUNT),
    ], axis=1).astype(jnp.int32)                        # (BATCH, 3)

    loss, pos_d, neg_d = transw_forward(
        entities_emb, relations_emb, ent_text_emb, rel_text_emb,
        positive_triplets, negative_triplets)
    jax.block_until_ready((loss, pos_d, neg_d))

    assert loss.shape == (BATCH,)
    assert pos_d.shape == (BATCH,)
    assert neg_d.shape == (BATCH,)
    print("KERNEL_OK")
</pallas_src>

<mosaic_0001>
module attributes {stable_mosaic.version = 11 : i64} {
  func.func @_fused_transw_kernel(%arg0: i32, %arg1: memref<16x3xi32, #tpu.memory_space<vmem>>, %arg2: memref<17x128xf32, #tpu.memory_space<vmem>>, %arg3: memref<5x128xf32, #tpu.memory_space<vmem>>, %arg4: memref<16x128xf32, #tpu.memory_space<vmem>>, %arg5: memref<4x128xf32, #tpu.memory_space<vmem>>, %arg6: memref<8x128xf32, #tpu.memory_space<vmem>>) attributes {dimension_semantics = [#tpu.dimension_semantics<arbitrary>], iteration_bounds = array<i64: 1>, scalar_prefetch = 0 : i64, scratch_operands = 0 : i64, tpu.core_type = #tpu.core_type<tc>, window_params = [{pipeline_mode = #tpu.pipeline_mode<synchronous>, transform_indices = @transform_0, window_bounds = array<i64: 16, 3>}, {pipeline_mode = #tpu.pipeline_mode<synchronous>, transform_indices = @transform_1, window_bounds = array<i64: 17, 128>}, {pipeline_mode = #tpu.pipeline_mode<synchronous>, transform_indices = @transform_2, window_bounds = array<i64: 5, 128>}, {pipeline_mode = #tpu.pipeline_mode<synchronous>, transform_indices = @transform_3, window_bounds = array<i64: 16, 128>}, {pipeline_mode = #tpu.pipeline_mode<synchronous>, transform_indices = @transform_4, window_bounds = array<i64: 4, 128>}, {pipeline_mode = #tpu.pipeline_mode<synchronous>, transform_indices = @transform_5, window_bounds = array<i64: 8, 128>}]} {
    %c0 = arith.constant 0 : index
    %c0_0 = arith.constant 0 : index
    %0 = vector.load %arg1[%c0, %c0_0] : memref<16x3xi32, #tpu.memory_space<vmem>>, vector<16x3xi32>
    %1 = vector.extract_strided_slice %0 {offsets = [0, 0], sizes = [16, 1], strides = [1, 1]} : vector<16x3xi32> to vector<16x1xi32>
    %2 = vector.extract_strided_slice %0 {offsets = [0, 1], sizes = [16, 1], strides = [1, 1]} : vector<16x3xi32> to vector<16x1xi32>
    %3 = vector.extract_strided_slice %0 {offsets = [0, 2], sizes = [16, 1], strides = [1, 1]} : vector<16x3xi32> to vector<16x1xi32>
    %c0_1 = arith.constant 0 : index
    %c0_2 = arith.constant 0 : index
    %4 = vector.load %arg2[%c0_1, %c0_2] : memref<17x128xf32, #tpu.memory_space<vmem>>, vector<17x128xf32>
    %c0_3 = arith.constant 0 : index
    %c0_4 = arith.constant 0 : index
    %5 = vector.load %arg3[%c0_3, %c0_4] : memref<5x128xf32, #tpu.memory_space<vmem>>, vector<5x128xf32>
    %c0_5 = arith.constant 0 : index
    %c0_6 = arith.constant 0 : index
    %6 = vector.load %arg4[%c0_5, %c0_6] : memref<16x128xf32, #tpu.memory_space<vmem>>, vector<16x128xf32>
    %c0_7 = arith.constant 0 : index
    %c0_8 = arith.constant 0 : index
    %7 = vector.load %arg5[%c0_7, %c0_8] : memref<4x128xf32, #tpu.memory_space<vmem>>, vector<4x128xf32>
    %8 = tpu.iota {dimensions = array<i32: 1>} : vector<16x17xi32>
    %9 = vector.broadcast %1 : vector<16x1xi32> to vector<16x17xi32>
    %10 = arith.cmpi eq, %8, %9 : vector<16x17xi32>
    %11 = arith.extui %10 : vector<16x17xi1> to vector<16x17xi32>
    %12 = arith.sitofp %11 : vector<16x17xi32> to vector<16x17xf32>
    %cst = arith.constant dense<0.000000e+00> : vector<16x128xf32>
    %13 = tpu.matmul %12, %4, %cst {dimension_numbers = #tpu.dot_dimension_numbers<[1], [0], [0], [1], [0, 0, 1, 1], [], []>} : vector<16x17xf32>, vector<17x128xf32>, vector<16x128xf32> -> vector<16x128xf32>
    %14 = tpu.iota {dimensions = array<i32: 1>} : vector<16x17xi32>
    %15 = vector.broadcast %3 : vector<16x1xi32> to vector<16x17xi32>
    %16 = arith.cmpi eq, %14, %15 : vector<16x17xi32>
    %17 = arith.extui %16 : vector<16x17xi1> to vector<16x17xi32>
    %18 = arith.sitofp %17 : vector<16x17xi32> to vector<16x17xf32>
    %cst_9 = arith.constant dense<0.000000e+00> : vector<16x128xf32>
    %19 = tpu.matmul %18, %4, %cst_9 {dimension_numbers = #tpu.dot_dimension_numbers<[1], [0], [0], [1], [0, 0, 1, 1], [], []>} : vector<16x17xf32>, vector<17x128xf32>, vector<16x128xf32> -> vector<16x128xf32>
    %20 = tpu.iota {dimensions = array<i32: 1>} : vector<16x16xi32>
    %21 = vector.broadcast %1 : vector<16x1xi32> to vector<16x16xi32>
    %22 = arith.cmpi eq, %20, %21 : vector<16x16xi32>
    %23 = arith.extui %22 : vector<16x16xi1> to vector<16x16xi32>
    %24 = arith.sitofp %23 : vector<16x16xi32> to vector<16x16xf32>
    %cst_10 = arith.constant dense<0.000000e+00> : vector<16x128xf32>
    %25 = tpu.matmul %24, %6, %cst_10 {dimension_numbers = #tpu.dot_dimension_numbers<[1], [0], [0], [1], [0, 0, 1, 1], [], []>} : vector<16x16xf32>, vector<16x128xf32>, vector<16x128xf32> -> vector<16x128xf32>
    %26 = tpu.iota {dimensions = array<i32: 1>} : vector<16x16xi32>
    %27 = vector.broadcast %3 : vector<16x1xi32> to vector<16x16xi32>
    %28 = arith.cmpi eq, %26, %27 : vector<16x16xi32>
    %29 = arith.extui %28 : vector<16x16xi1> to vector<16x16xi32>
    %30 = arith.sitofp %29 : vector<16x16xi32> to vector<16x16xf32>
    %cst_11 = arith.constant dense<0.000000e+00> : vector<16x128xf32>
    %31 = tpu.matmul %30, %6, %cst_11 {dimension_numbers = #tpu.dot_dimension_numbers<[1], [0], [0], [1], [0, 0, 1, 1], [], []>} : vector<16x16xf32>, vector<16x128xf32>, vector<16x128xf32> -> vector<16x128xf32>
    %32 = tpu.iota {dimensions = array<i32: 1>} : vector<16x5xi32>
    %33 = vector.broadcast %2 : vector<16x1xi32> to vector<16x5xi32>
    %34 = arith.cmpi eq, %32, %33 : vector<16x5xi32>
    %35 = arith.extui %34 : vector<16x5xi1> to vector<16x5xi32>
    %36 = arith.sitofp %35 : vector<16x5xi32> to vector<16x5xf32>
    %cst_12 = arith.constant dense<0.000000e+00> : vector<16x128xf32>
    %37 = tpu.matmul %36, %5, %cst_12 {dimension_numbers = #tpu.dot_dimension_numbers<[1], [0], [0], [1], [0, 0, 1, 1], [], []>} : vector<16x5xf32>, vector<5x128xf32>, vector<16x128xf32> -> vector<16x128xf32>
    %38 = tpu.iota {dimensions = array<i32: 1>} : vector<16x4xi32>
    %39 = vector.broadcast %2 : vector<16x1xi32> to vector<16x4xi32>
    %40 = arith.cmpi eq, %38, %39 : vector<16x4xi32>
    %41 = arith.extui %40 : vector<16x4xi1> to vector<16x4xi32>
    %42 = arith.sitofp %41 : vector<16x4xi32> to vector<16x4xf32>
    %cst_13 = arith.constant dense<0.000000e+00> : vector<16x128xf32>
    %43 = tpu.matmul %42, %7, %cst_13 {dimension_numbers = #tpu.dot_dimension_numbers<[1], [0], [0], [1], [0, 0, 1, 1], [], []>} : vector<16x4xf32>, vector<4x128xf32>, vector<16x128xf32> -> vector<16x128xf32>
    %44 = arith.mulf %13, %13 : vector<16x128xf32>
    %cst_14 = arith.constant dense<0.000000e+00> : vector<16xf32>
    %45 = vector.multi_reduction <add>, %44, %cst_14 [1] : vector<16x128xf32> to vector<16xf32>
    %46 = vector.shape_cast %45 : vector<16xf32> to vector<16x1xf32>
    %cst_15 = arith.constant 1.000000e-24 : f32
    %47 = vector.broadcast %cst_15 : f32 to vector<16x1xf32>
    %48 = arith.maximumf %46, %47 : vector<16x1xf32>
    %49 = math.rsqrt %48 : vector<16x1xf32>
    %50 = vector.broadcast %49 : vector<16x1xf32> to vector<16x128xf32>
    %51 = arith.mulf %13, %50 : vector<16x128xf32>
    %52 = arith.mulf %51, %25 : vector<16x128xf32>
    %53 = arith.mulf %37, %43 : vector<16x128xf32>
    %54 = arith.addf %52, %53 : vector<16x128xf32>
    %55 = arith.mulf %19, %19 : vector<16x128xf32>
    %cst_16 = arith.constant dense<0.000000e+00> : vector<16xf32>
    %56 = vector.multi_reduction <add>, %55, %cst_16 [1] : vector<16x128xf32> to vector<16xf32>
    %57 = vector.shape_cast %56 : vector<16xf32> to vector<16x1xf32>
    %cst_17 = arith.constant 1.000000e-24 : f32
    %58 = vector.broadcast %cst_17 : f32 to vector<16x1xf32>
    %59 = arith.maximumf %57, %58 : vector<16x1xf32>
    %60 = math.rsqrt %59 : vector<16x1xf32>
    %61 = vector.broadcast %60 : vector<16x1xf32> to vector<16x128xf32>
    %62 = arith.mulf %19, %61 : vector<16x128xf32>
    %63 = arith.mulf %62, %31 : vector<16x128xf32>
    %64 = arith.subf %54, %63 : vector<16x128xf32>
    %65 = math.absf %64 : vector<16x128xf32>
    %cst_18 = arith.constant dense<0.000000e+00> : vector<16xf32>
    %66 = vector.multi_reduction <add>, %65, %cst_18 [1] : vector<16x128xf32> to vector<16xf32>
    %67 = vector.shape_cast %66 : vector<16xf32> to vector<16x1xf32>
    %68 = vector.extract_strided_slice %67 {offsets = [0, 0], sizes = [8, 1], strides = [1, 1]} : vector<16x1xf32> to vector<8x1xf32>
    %69 = vector.extract_strided_slice %67 {offsets = [8, 0], sizes = [8, 1], strides = [1, 1]} : vector<16x1xf32> to vector<8x1xf32>
    %70 = arith.subf %68, %69 : vector<8x1xf32>
    %cst_19 = arith.constant 1.000000e+00 : f32
    %71 = vector.broadcast %cst_19 : f32 to vector<8x1xf32>
    %72 = arith.addf %70, %71 : vector<8x1xf32>
    %cst_20 = arith.constant 0.000000e+00 : f32
    %73 = vector.broadcast %cst_20 : f32 to vector<8x1xf32>
    %74 = arith.maximumf %72, %73 : vector<8x1xf32>
    %75 = tpu.iota {dimensions = array<i32: 1>} : vector<8x128xi32>
    %c0_i32 = arith.constant 0 : i32
    %76 = vector.broadcast %c0_i32 : i32 to vector<8x128xi32>
    %77 = arith.cmpi eq, %75, %76 : vector<8x128xi32>
    %c1_i32 = arith.constant 1 : i32
    %78 = vector.broadcast %c1_i32 : i32 to vector<8x128xi32>
    %79 = arith.cmpi eq, %75, %78 : vector<8x128xi32>
    %c2_i32 = arith.constant 2 : i32
    %80 = vector.broadcast %c2_i32 : i32 to vector<8x128xi32>
    %81 = arith.cmpi eq, %75, %80 : vector<8x128xi32>
    %cst_21 = arith.constant 0.000000e+00 : f32
    %82 = vector.shape_cast %74 : vector<8x1xf32> to vector<8x1xf32>
    %83 = vector.broadcast %82 : vector<8x1xf32> to vector<8x128xf32>
    %84 = vector.broadcast %cst_21 : f32 to vector<8x128xf32>
    %85 = arith.select %81, %83, %84 : vector<8x128xi1>, vector<8x128xf32>
    %86 = vector.shape_cast %69 : vector<8x1xf32> to vector<8x1xf32>
    %87 = vector.broadcast %86 : vector<8x1xf32> to vector<8x128xf32>
    %88 = arith.select %79, %87, %85 : vector<8x128xi1>, vector<8x128xf32>
    %89 = vector.shape_cast %68 : vector<8x1xf32> to vector<8x1xf32>
    %90 = vector.broadcast %89 : vector<8x1xf32> to vector<8x128xf32>
    %91 = arith.select %77, %90, %88 : vector<8x128xi1>, vector<8x128xf32>
    %c0_22 = arith.constant 0 : index
    %c0_23 = arith.constant 0 : index
    %92 = vector.load %arg6[%c0_22, %c0_23] : memref<8x128xf32, #tpu.memory_space<vmem>>, vector<8x128xf32>
    tpu.vector_store %arg6[%c0_22, %c0_23], %91 {strides = array<i32>} : memref<8x128xf32, #tpu.memory_space<vmem>>, vector<8x128xf32>,
    return
  }
  func.func @transform_0(%arg0: i32) -> (i32, i32) {
    %c0_i32 = arith.constant 0 : i32
    %c0_i32_0 = arith.constant 0 : i32
    %c0_i32_1 = arith.constant 0 : i32
    return %c0_i32, %c0_i32_0 : i32, i32
  }
  func.func @transform_1(%arg0: i32) -> (i32, i32) {
    %c0_i32 = arith.constant 0 : i32
    %c0_i32_0 = arith.constant 0 : i32
    %c0_i32_1 = arith.constant 0 : i32
    return %c0_i32, %c0_i32_0 : i32, i32
  }
  func.func @transform_2(%arg0: i32) -> (i32, i32) {
    %c0_i32 = arith.constant 0 : i32
    %c0_i32_0 = arith.constant 0 : i32
    %c0_i32_1 = arith.constant 0 : i32
    return %c0_i32, %c0_i32_0 : i32, i32
  }
  func.func @transform_3(%arg0: i32) -> (i32, i32) {
    %c0_i32 = arith.constant 0 : i32
    %c0_i32_0 = arith.constant 0 : i32
    %c0_i32_1 = arith.constant 0 : i32
    return %c0_i32, %c0_i32_0 : i32, i32
  }
  func.func @transform_4(%arg0: i32) -> (i32, i32) {
    %c0_i32 = arith.constant 0 : i32
    %c0_i32_0 = arith.constant 0 : i32
    %c0_i32_1 = arith.constant 0 : i32
    return %c0_i32, %c0_i32_0 : i32, i32
  }
  func.func @transform_5(%arg0: i32) -> (i32, i32) {
    %c0_i32 = arith.constant 0 : i32
    %c0_i32_0 = arith.constant 0 : i32
    %c0_i32_1 = arith.constant 0 : i32
    return %c0_i32, %c0_i32_0 : i32, i32
  }
}

</mosaic_0001>

<llo_original>
// kernel: transw_forward.1
$region0: #{transw_forward.1}
  #allocation0 [shape = 'u32[]', space=smem, size = 0x4, offset = 0x4, fixed_abs, tag = 'smem constant byte address 0x4 - core index']
  #allocation1 [shape = 'u32[144,128]{1,0:T(1,128)}', space=vmem, size = 0x12000, scoped, tag = 'internal scratch']
  %s0 = inlined_call_operand.vmem [shape: s32[16,3], index: 0, kind: input, shape index: {}]
  %s1 = inlined_call_operand.vmem [shape: f32[17,128], index: 1, kind: input, shape index: {}]
  %s2 = inlined_call_operand.vmem [shape: f32[5,128], index: 2, kind: input, shape index: {}]
  %s3 = inlined_call_operand.hbm [shape: f32[16,128], index: 3, kind: input, shape index: {}]
  %s4 = inlined_call_operand.hbm [shape: f32[4,128], index: 4, kind: input, shape index: {}]
  %s5 = inlined_call_operand.vmem [shape: f32[8,128], index: 5, kind: output, shape index: {}]
  %s6 = sld [smem:[#allocation0]]
  $region38: #{transw_forward.1} parent=0
    _
  %s8 = ssub.s32 1, %s6
  %s9 = scalar_select 0, %s8, %s6
  $region1: #{transw_forward.1} parent=0
    #allocation2 [shape = 'u8[8192]{0}', space=vmem, size = 0x2000, scoped, tag = 'input window, operand 3, single buffered']
    #allocation3 [shape = 's32[1]{0}', space=sflag, size = 0x4, scoped, tag = 'scoped memory for transw_forward.1']
    #allocation4 [shape = 'u8[2048]{0}', space=vmem, size = 0x800, scoped, tag = 'input window, operand 4, single buffered']
    #allocation5 [shape = 's32[1]{0}', space=sflag, size = 0x4, scoped, tag = 'scoped memory for transw_forward.1']
    %10 = vsyncpa [#allocation3], 0
    %11 = vsyncpa [#allocation5], 0
    // Predicated region
    $region2: #{transw_forward.1} parent=1 // pred_check
      _
    $region3: #{transw_forward.1} parent=1 // pred_check_branch
      %13 = sbr.rel (0) target = $region5
    $region4: #{transw_forward.1} parent=1 // pred_region
      _
    $region5: #{transw_forward.1} parent=1 // pred_fallthru
      _
    // Predicated region
    $region6: #{transw_forward.1} parent=1 // pred_check
      _
    $region7: #{transw_forward.1} parent=1 // pred_check_branch
      %15 = sbr.rel (0) target = $region9
    $region8: #{transw_forward.1} parent=1 // pred_region
      _
    $region9: #{transw_forward.1} parent=1 // pred_fallthru
      _
    // Predicated region
    $region10: #{transw_forward.1} parent=1 // pred_check
      _
    $region11: #{transw_forward.1} parent=1 // pred_check_branch
      %17 = sbr.rel (0) target = $region13
    $region12: #{transw_forward.1} parent=1 // pred_region
      _
    $region13: #{transw_forward.1} parent=1 // pred_fallthru
      _
    // Predicated region
    $region14: #{transw_forward.1} parent=1 // pred_check
      _
    $region15: #{transw_forward.1} parent=1 // pred_check_branch
      %19 = sbr.rel (0) target = $region17
    $region16: #{transw_forward.1} parent=1 // pred_region
      %s21 = ssub.s32 256, 256
      %22 = vsyncadd [#allocation3], %s21
      %s23 = sshll.u32 [#allocation2], 4
      %s24 = int_to_ptr.vmem [resolvable:$true] %s23
      %29 = dma.hbm_to_vmem [thread:$0]  %s3, 256, %s24, [#allocation3], 128, 128, 8
    $region17: #{transw_forward.1} parent=1 // pred_fallthru
      _
    // Predicated region
    $region18: #{transw_forward.1} parent=1 // pred_check
      _
    $region19: #{transw_forward.1} parent=1 // pred_check_branch
      %31 = sbr.rel (0) target = $region21
    $region20: #{transw_forward.1} parent=1 // pred_region
      %s33 = ssub.s32 64, 64
      %34 = vsyncadd [#allocation5], %s33
      %s36 = sshll.u32 [#allocation4], 4
      %s37 = int_to_ptr.vmem [resolvable:$true] %s36
      %39 = dma.hbm_to_vmem [thread:$0]  %s4, 64, %s37, [#allocation5]
    $region21: #{transw_forward.1} parent=1 // pred_fallthru
      _
    // Predicated region
    $region22: #{transw_forward.1} parent=1 // pred_check
      _
    $region23: #{transw_forward.1} parent=1 // pred_check_branch
      %41 = sbr.rel (0) target = $region25
    $region24: #{transw_forward.1} parent=1 // pred_region
      %42 = dma.done [#allocation3], 256
    $region25: #{transw_forward.1} parent=1 // pred_fallthru
      _
    // Predicated region
    $region26: #{transw_forward.1} parent=1 // pred_check
      _
    $region27: #{transw_forward.1} parent=1 // pred_check_branch
      %44 = sbr.rel (0) target = $region29
    $region28: #{transw_forward.1} parent=1 // pred_region
      %45 = dma.done [#allocation5], 64
    $region29: #{transw_forward.1} parent=1 // pred_fallthru
      _
    %v46 = vld [vmem:[%s0] sm:$0xff]
    %v47 = vld [vmem:[%s0 + $0x8] sm:$0xff]
    %v48 = vld [vmem:[%s1] sm:$0xff]
    %v49 = vld [vmem:[%s1 + $0x8] sm:$0xff]
    %v50 = vld [vmem:[%s1 + $0x10] sm:$0x1]
    %v51 = vld [vmem:[%s2] sm:$0x1f]
    %v52 = vld [vmem:[#allocation2] sm:$0xff]
    %v53 = vld [vmem:[#allocation2 + $0x8] sm:$0xff]
    %v54 = vld [vmem:[#allocation4] sm:$0xf]
    %v55 = vlaneseq
    %v56 = vand.u32 %v55, 127
    %57 = vset.pattern.permute.xlu0 0
    %58 = vperm.xlu0 %57, %v46
    %v59 = vpop.permute.xlu0 %58
    %60 = vset.pattern.permute.xlu0 0
    %61 = vperm.xlu0 %60, %v47
    %v62 = vpop.permute.xlu0 %61
    %vm63 = vcmp.eq.s32.totalorder %v56, %v59
    %vm64 = vcmp.eq.s32.totalorder %v56, %v62
    %v65 = vsel %vm63, 1, 0
    %v66 = vsel %vm64, 1, 0
    %v67 = vcvt.s32.f32 %v65
    %v68 = vcvt.s32.f32 %v66
    %vm69 = vcmask 138240
    %v71 = vsel %vm69, %v67, 0
    %v74 = vsel %vm69, %v68, 0
    %vm76 = vcmask 1040384
    %v78 = vsel %vm76, %v50, 0
    %80 = vmatprep.subr.mxu0 0.0
    %81 = vmatpush1.msra.mxu0 0.0
    %82 = vmatprep.subr.mxu0 0.0
    %83 = vmatpush1.msra.mxu0 0.0
    %84 = vmatprep.subr.mxu0 0.0
    %85 = vmatpush1.msra.mxu0 0.0
    %86 = vmatprep.subr.mxu0 0.0
    %87 = vmatpush1.msra.mxu0 0.0
    %88 = vmatprep.subr.mxu0 0.0
    %89 = vmatpush1.msra.mxu0 0.0
    %90 = vmatprep.subr.mxu0 0.0
    %91 = vmatpush1.msra.mxu0 0.0
    %92 = vmatprep.subr.mxu0 0.0
    %93 = vmatpush1.msra.mxu0 0.0
    %94 = vmatprep.subr.mxu0 0.0
    %95 = vmatpush1.msra.mxu0 0.0
    %96 = vmatprep.subr.mxu0 0.0
    %97 = vmatpush1.msra.mxu0 0.0
    %98 = vmatprep.subr.mxu0 0.0
    %99 = vmatpush1.msra.mxu0 0.0
    %100 = vmatprep.subr.mxu0 0.0
    %101 = vmatpush1.msra.mxu0 0.0
    %102 = vmatprep.subr.mxu0 0.0
    %103 = vmatpush1.msra.mxu0 0.0
    %104 = vmatprep.subr.mxu0 0.0
    %105 = vmatpush1.msra.mxu0 0.0
    %106 = vmatprep.subr.mxu0 0.0
    %107 = vmatpush1.msra.mxu0 %v78
    %108 = vmatprep.subr.mxu0 0.0
    %109 = vmatpush1.msra.mxu0 %v49
    %110 = vmatprep.subr.mxu0 0.0
    %111 = vmatpush1.msra.mxu0 %v48
    %112 = vmatprep.subr.mxu0 0.0
    %113 = vmatpush2.msra.mxu0 0.0
    %114 = vmatprep.subr.mxu0 0.0
    %115 = vmatpush2.msra.mxu0 0.0
    %116 = vmatprep.subr.mxu0 0.0
    %117 = vmatpush2.msra.mxu0 0.0
    %118 = vmatprep.subr.mxu0 0.0
    %119 = vmatpush2.msra.mxu0 0.0
    %120 = vmatprep.subr.mxu0 0.0
    %121 = vmatpush2.msra.mxu0 0.0
    %122 = vmatprep.subr.mxu0 0.0
    %123 = vmatpush2.msra.mxu0 0.0
    %124 = vmatprep.subr.mxu0 0.0
    %125 = vmatpush2.msra.mxu0 0.0
    %126 = vmatprep.subr.mxu0 0.0
    %127 = vmatpush2.msra.mxu0 0.0
    %128 = vmatprep.subr.mxu0 0.0
    %129 = vmatpush2.msra.mxu0 0.0
    %130 = vmatprep.subr.mxu0 0.0
    %131 = vmatpush2.msra.mxu0 0.0
    %132 = vmatprep.subr.mxu0 0.0
    %133 = vmatpush2.msra.mxu0 0.0
    %134 = vmatprep.subr.mxu0 0.0
    %135 = vmatpush2.msra.mxu0 0.0
    %136 = vmatprep.subr.mxu0 0.0
    %137 = vmatpush2.msra.mxu0 0.0
    %138 = vmatprep.subr.mxu0 0.0
    %139 = vmatpush2.msra.mxu0 0.0
    %140 = vmatprep.subr.mxu0 0.0
    %141 = vmatpush2.msra.mxu0 0.0
    %142 = vmatprep.subr.mxu0 0.0
    %143 = vmatpush2.msra.mxu0 0.0
    %144 = vmatprep.mubr.f32.mxu0 0.0
    %145 = vmatmul.mubr.f32.gmra.mxu0 %v71
    %v146 = vpop.f32.mrf.mxu0
    %v147 = vadd.f32 0.0, %v146
    %v148 = vpop.f32.mrf.mxu0
    %149 = vmatprep.mubr.f32.mxu0 0.0
    %150 = vmatmul.mubr.f32.gmra.mxu0 %v74
    %v151 = vpop.f32.mrf.mxu0
    %v152 = vadd.f32 0.0, %v151
    %v153 = vpop.f32.mrf.mxu0
    %154 = vdwg.mxu0
    %155 = vset.pattern.permute.xlu0 2
    %156 = vperm.xlu0 %155, %v46
    %v157 = vpop.permute.xlu0 %156
    %158 = vset.pattern.permute.xlu0 2
    %159 = vperm.xlu0 %158, %v47
    %v160 = vpop.permute.xlu0 %159
    %vm161 = vcmp.eq.s32.totalorder %v56, %v157
    %vm162 = vcmp.eq.s32.totalorder %v56, %v160
    %v163 = vsel %vm161, 1, 0
    %v164 = vsel %vm162, 1, 0
    %v165 = vcvt.s32.f32 %v163
    %v166 = vcvt.s32.f32 %v164
    %v168 = vsel %vm69, %v165, 0
    %v171 = vsel %vm69, %v166, 0
    %173 = vmatprep.subr.mxu0 0.0
    %174 = vmatpush1.msra.mxu0 0.0
    %175 = vmatprep.subr.mxu0 0.0
    %176 = vmatpush1.msra.mxu0 0.0
    %177 = vmatprep.subr.mxu0 0.0
    %178 = vmatpush1.msra.mxu0 0.0
    %179 = vmatprep.subr.mxu0 0.0
    %180 = vmatpush1.msra.mxu0 0.0
    %181 = vmatprep.subr.mxu0 0.0
    %182 = vmatpush1.msra.mxu0 0.0
    %183 = vmatprep.subr.mxu0 0.0
    %184 = vmatpush1.msra.mxu0 0.0
    %185 = vmatprep.subr.mxu0 0.0
    %186 = vmatpush1.msra.mxu0 0.0
    %187 = vmatprep.subr.mxu0 0.0
    %188 = vmatpush1.msra.mxu0 0.0
    %189 = vmatprep.subr.mxu0 0.0
    %190 = vmatpush1.msra.mxu0 0.0
    %191 = vmatprep.subr.mxu0 0.0
    %192 = vmatpush1.msra.mxu0 0.0
    %193 = vmatprep.subr.mxu0 0.0
    %194 = vmatpush1.msra.mxu0 0.0
    %195 = vmatprep.subr.mxu0 0.0
    %196 = vmatpush1.msra.mxu0 0.0
    %197 = vmatprep.subr.mxu0 0.0
    %198 = vmatpush1.msra.mxu0 0.0
    %199 = vmatprep.subr.mxu0 0.0
    %200 = vmatpush1.msra.mxu0 %v78
    %201 = vmatprep.subr.mxu0 0.0
    %202 = vmatpush1.msra.mxu0 %v49
    %203 = vmatprep.subr.mxu0 0.0
    %204 = vmatpush1.msra.mxu0 %v48
    %205 = vmatprep.subr.mxu0 0.0
    %206 = vmatpush2.msra.mxu0 0.0
    %207 = vmatprep.subr.mxu0 0.0
    %208 = vmatpush2.msra.mxu0 0.0
    %209 = vmatprep.subr.mxu0 0.0
    %210 = vmatpush2.msra.mxu0 0.0
    %211 = vmatprep.subr.mxu0 0.0
    %212 = vmatpush2.msra.mxu0 0.0
    %213 = vmatprep.subr.mxu0 0.0
    %214 = vmatpush2.msra.mxu0 0.0
    %215 = vmatprep.subr.mxu0 0.0
    %216 = vmatpush2.msra.mxu0 0.0
    %217 = vmatprep.subr.mxu0 0.0
    %218 = vmatpush2.msra.mxu0 0.0
    %219 = vmatprep.subr.mxu0 0.0
    %220 = vmatpush2.msra.mxu0 0.0
    %221 = vmatprep.subr.mxu0 0.0
    %222 = vmatpush2.msra.mxu0 0.0
    %223 = vmatprep.subr.mxu0 0.0
    %224 = vmatpush2.msra.mxu0 0.0
    %225 = vmatprep.subr.mxu0 0.0
    %226 = vmatpush2.msra.mxu0 0.0
    %227 = vmatprep.subr.mxu0 0.0
    %228 = vmatpush2.msra.mxu0 0.0
    %229 = vmatprep.subr.mxu0 0.0
    %230 = vmatpush2.msra.mxu0 0.0
    %231 = vmatprep.subr.mxu0 0.0
    %232 = vmatpush2.msra.mxu0 0.0
    %233 = vmatprep.subr.mxu0 0.0
    %234 = vmatpush2.msra.mxu0 0.0
    %235 = vmatprep.subr.mxu0 0.0
    %236 = vmatpush2.msra.mxu0 0.0
    %237 = vmatprep.mubr.f32.mxu0 0.0
    %238 = vmatmul.mubr.f32.gmra.mxu0 %v168
    %v239 = vpop.f32.mrf.mxu0
    %v240 = vadd.f32 0.0, %v239
    %v241 = vpop.f32.mrf.mxu0
    %242 = vmatprep.mubr.f32.mxu0 0.0
    %243 = vmatmul.mubr.f32.gmra.mxu0 %v171
    %v244 = vpop.f32.mrf.mxu0
    %v245 = vadd.f32 0.0, %v244
    %v246 = vpop.f32.mrf.mxu0
    %247 = vdwg.mxu0
    %vm248 = vcmask 130048
    %v249 = vsel %vm248, %v67, 0
    %v251 = vsel %vm248, %v68, 0
    %253 = vmatprep.subr.mxu0 0.0
    %254 = vmatpush1.msra.mxu0 0.0
    %255 = vmatprep.subr.mxu0 0.0
    %256 = vmatpush1.msra.mxu0 0.0
    %257 = vmatprep.subr.mxu0 0.0
    %258 = vmatpush1.msra.mxu0 0.0
    %259 = vmatprep.subr.mxu0 0.0
    %260 = vmatpush1.msra.mxu0 0.0
    %261 = vmatprep.subr.mxu0 0.0
    %262 = vmatpush1.msra.mxu0 0.0
    %263 = vmatprep.subr.mxu0 0.0
    %264 = vmatpush1.msra.mxu0 0.0
    %265 = vmatprep.subr.mxu0 0.0
    %266 = vmatpush1.msra.mxu0 0.0
    %267 = vmatprep.subr.mxu0 0.0
    %268 = vmatpush1.msra.mxu0 0.0
    %269 = vmatprep.subr.mxu0 0.0
    %270 = vmatpush1.msra.mxu0 0.0
    %271 = vmatprep.subr.mxu0 0.0
    %272 = vmatpush1.msra.mxu0 0.0
    %273 = vmatprep.subr.mxu0 0.0
    %274 = vmatpush1.msra.mxu0 0.0
    %275 = vmatprep.subr.mxu0 0.0
    %276 = vmatpush1.msra.mxu0 0.0
    %277 = vmatprep.subr.mxu0 0.0
    %278 = vmatpush1.msra.mxu0 0.0
    %279 = vmatprep.subr.mxu0 0.0
    %280 = vmatpush1.msra.mxu0 0.0
    %281 = vmatprep.subr.mxu0 0.0
    %282 = vmatpush1.msra.mxu0 %v53
    %283 = vmatprep.subr.mxu0 0.0
    %284 = vmatpush1.msra.mxu0 %v52
    %285 = vmatprep.subr.mxu0 0.0
    %286 = vmatpush2.msra.mxu0 0.0
    %287 = vmatprep.subr.mxu0 0.0
    %288 = vmatpush2.msra.mxu0 0.0
    %289 = vmatprep.subr.mxu0 0.0
    %290 = vmatpush2.msra.mxu0 0.0
    %291 = vmatprep.subr.mxu0 0.0
    %292 = vmatpush2.msra.mxu0 0.0
    %293 = vmatprep.subr.mxu0 0.0
    %294 = vmatpush2.msra.mxu0 0.0
    %295 = vmatprep.subr.mxu0 0.0
    %296 = vmatpush2.msra.mxu0 0.0
    %297 = vmatprep.subr.mxu0 0.0
    %298 = vmatpush2.msra.mxu0 0.0
    %299 = vmatprep.subr.mxu0 0.0
    %300 = vmatpush2.msra.mxu0 0.0
    %301 = vmatprep.subr.mxu0 0.0
    %302 = vmatpush2.msra.mxu0 0.0
    %303 = vmatprep.subr.mxu0 0.0
    %304 = vmatpush2.msra.mxu0 0.0
    %305 = vmatprep.subr.mxu0 0.0
    %306 = vmatpush2.msra.mxu0 0.0
    %307 = vmatprep.subr.mxu0 0.0
    %308 = vmatpush2.msra.mxu0 0.0
    %309 = vmatprep.subr.mxu0 0.0
    %310 = vmatpush2.msra.mxu0 0.0
    %311 = vmatprep.subr.mxu0 0.0
    %312 = vmatpush2.msra.mxu0 0.0
    %313 = vmatprep.subr.mxu0 0.0
    %314 = vmatpush2.msra.mxu0 0.0
    %315 = vmatprep.subr.mxu0 0.0
    %316 = vmatpush2.msra.mxu0 0.0
    %317 = vmatprep.mubr.f32.mxu0 0.0
    %318 = vmatmul.mubr.f32.gmra.mxu0 %v249
    %v319 = vpop.f32.mrf.mxu0
    %v320 = vadd.f32 0.0, %v319
    %v321 = vpop.f32.mrf.mxu0
    %322 = vmatprep.mubr.f32.mxu0 0.0
    %323 = vmatmul.mubr.f32.gmra.mxu0 %v251
    %v324 = vpop.f32.mrf.mxu0
    %v325 = vadd.f32 0.0, %v324
    %v326 = vpop.f32.mrf.mxu0
    %327 = vdwg.mxu0
    %v328 = vsel %vm248, %v165, 0
    %v330 = vsel %vm248, %v166, 0
    %332 = vmatprep.subr.mxu0 0.0
    %333 = vmatpush1.msra.mxu0 0.0
    %334 = vmatprep.subr.mxu0 0.0
    %335 = vmatpush1.msra.mxu0 0.0
    %336 = vmatprep.subr.mxu0 0.0
    %337 = vmatpush1.msra.mxu0 0.0
    %338 = vmatprep.subr.mxu0 0.0
    %339 = vmatpush1.msra.mxu0 0.0
    %340 = vmatprep.subr.mxu0 0.0
    %341 = vmatpush1.msra.mxu0 0.0
    %342 = vmatprep.subr.mxu0 0.0
    %343 = vmatpush1.msra.mxu0 0.0
    %344 = vmatprep.subr.mxu0 0.0
    %345 = vmatpush1.msra.mxu0 0.0
    %346 = vmatprep.subr.mxu0 0.0
    %347 = vmatpush1.msra.mxu0 0.0
    %348 = vmatprep.subr.mxu0 0.0
    %349 = vmatpush1.msra.mxu0 0.0
    %350 = vmatprep.subr.mxu0 0.0
    %351 = vmatpush1.msra.mxu0 0.0
    %352 = vmatprep.subr.mxu0 0.0
    %353 = vmatpush1.msra.mxu0 0.0
    %354 = vmatprep.subr.mxu0 0.0
    %355 = vmatpush1.msra.mxu0 0.0
    %356 = vmatprep.subr.mxu0 0.0
    %357 = vmatpush1.msra.mxu0 0.0
    %358 = vmatprep.subr.mxu0 0.0
    %359 = vmatpush1.msra.mxu0 0.0
    %360 = vmatprep.subr.mxu0 0.0
    %361 = vmatpush1.msra.mxu0 %v53
    %362 = vmatprep.subr.mxu0 0.0
    %363 = vmatpush1.msra.mxu0 %v52
    %364 = vmatprep.subr.mxu0 0.0
    %365 = vmatpush2.msra.mxu0 0.0
    %366 = vmatprep.subr.mxu0 0.0
    %367 = vmatpush2.msra.mxu0 0.0
    %368 = vmatprep.subr.mxu0 0.0
    %369 = vmatpush2.msra.mxu0 0.0
    %370 = vmatprep.subr.mxu0 0.0
    %371 = vmatpush2.msra.mxu0 0.0
    %372 = vmatprep.subr.mxu0 0.0
    %373 = vmatpush2.msra.mxu0 0.0
    %374 = vmatprep.subr.mxu0 0.0
    %375 = vmatpush2.msra.mxu0 0.0
    %376 = vmatprep.subr.mxu0 0.0
    %377 = vmatpush2.msra.mxu0 0.0
    %378 = vmatprep.subr.mxu0 0.0
    %379 = vmatpush2.msra.mxu0 0.0
    %380 = vmatprep.subr.mxu0 0.0
    %381 = vmatpush2.msra.mxu0 0.0
    %382 = vmatprep.subr.mxu0 0.0
    %383 = vmatpush2.msra.mxu0 0.0
    %384 = vmatprep.subr.mxu0 0.0
    %385 = vmatpush2.msra.mxu0 0.0
    %386 = vmatprep.subr.mxu0 0.0
    %387 = vmatpush2.msra.mxu0 0.0
    %388 = vmatprep.subr.mxu0 0.0
    %389 = vmatpush2.msra.mxu0 0.0
    %390 = vmatprep.subr.mxu0 0.0
    %391 = vmatpush2.msra.mxu0 0.0
    %392 = vmatprep.subr.mxu0 0.0
    %393 = vmatpush2.msra.mxu0 0.0
    %394 = vmatprep.subr.mxu0 0.0
    %395 = vmatpush2.msra.mxu0 0.0
    %396 = vmatprep.mubr.f32.mxu0 0.0
    %397 = vmatmul.mubr.f32.gmra.mxu0 %v328
    %v398 = vpop.f32.mrf.mxu0
    %v399 = vadd.f32 0.0, %v398
    %v400 = vpop.f32.mrf.mxu0
    %401 = vmatprep.mubr.f32.mxu0 0.0
    %402 = vmatmul.mubr.f32.gmra.mxu0 %v330
    %v403 = vpop.f32.mrf.mxu0
    %v404 = vadd.f32 0.0, %v403
    %v405 = vpop.f32.mrf.mxu0
    %406 = vdwg.mxu0
    %407 = vset.pattern.permute.xlu0 1
    %408 = vperm.xlu0 %407, %v46
    %v409 = vpop.permute.xlu0 %408
    %410 = vset.pattern.permute.xlu0 1
    %411 = vperm.xlu0 %410, %v47
    %v412 = vpop.permute.xlu0 %411
    %vm413 = vcmp.eq.s32.totalorder %v56, %v409
    %vm414 = vcmp.eq.s32.totalorder %v56, %v412
    %v415 = vsel %vm413, 1, 0
    %v416 = vsel %vm414, 1, 0
    %v417 = vcvt.s32.f32 %v415
    %v418 = vcvt.s32.f32 %v416
    %vm419 = vcmask 39936
    %v421 = vsel %vm419, %v417, 0
    %v424 = vsel %vm419, %v418, 0
    %vm426 = vcmask 1044480
    %v428 = vsel %vm426, %v51, 0
    %430 = vmatprep.subr.mxu0 0.0
    %431 = vmatpush1.msra.mxu0 0.0
    %432 = vmatprep.subr.mxu0 0.0
    %433 = vmatpush1.msra.mxu0 0.0
    %434 = vmatprep.subr.mxu0 0.0
    %435 = vmatpush1.msra.mxu0 0.0
    %436 = vmatprep.subr.mxu0 0.0
    %437 = vmatpush1.msra.mxu0 0.0
    %438 = vmatprep.subr.mxu0 0.0
    %439 = vmatpush1.msra.mxu0 0.0
    %440 = vmatprep.subr.mxu0 0.0
    %441 = vmatpush1.msra.mxu0 0.0
    %442 = vmatprep.subr.mxu0 0.0
    %443 = vmatpush1.msra.mxu0 0.0
    %444 = vmatprep.subr.mxu0 0.0
    %445 = vmatpush1.msra.mxu0 0.0
    %446 = vmatprep.subr.mxu0 0.0
    %447 = vmatpush1.msra.mxu0 0.0
    %448 = vmatprep.subr.mxu0 0.0
    %449 = vmatpush1.msra.mxu0 0.0
    %450 = vmatprep.subr.mxu0 0.0
    %451 = vmatpush1.msra.mxu0 0.0
    %452 = vmatprep.subr.mxu0 0.0
    %453 = vmatpush1.msra.mxu0 0.0
    %454 = vmatprep.subr.mxu0 0.0
    %455 = vmatpush1.msra.mxu0 0.0
    %456 = vmatprep.subr.mxu0 0.0
    %457 = vmatpush1.msra.mxu0 0.0
    %458 = vmatprep.subr.mxu0 0.0
    %459 = vmatpush1.msra.mxu0 0.0
    %460 = vmatprep.subr.mxu0 0.0
    %461 = vmatpush1.msra.mxu0 %v428
    %462 = vmatprep.subr.mxu0 0.0
    %463 = vmatpush2.msra.mxu0 0.0
    %464 = vmatprep.subr.mxu0 0.0
    %465 = vmatpush2.msra.mxu0 0.0
    %466 = vmatprep.subr.mxu0 0.0
    %467 = vmatpush2.msra.mxu0 0.0
    %468 = vmatprep.subr.mxu0 0.0
    %469 = vmatpush2.msra.mxu0 0.0
    %470 = vmatprep.subr.mxu0 0.0
    %471 = vmatpush2.msra.mxu0 0.0
    %472 = vmatprep.subr.mxu0 0.0
    %473 = vmatpush2.msra.mxu0 0.0
    %474 = vmatprep.subr.mxu0 0.0
    %475 = vmatpush2.msra.mxu0 0.0
    %476 = vmatprep.subr.mxu0 0.0
    %477 = vmatpush2.msra.mxu0 0.0
    %478 = vmatprep.subr.mxu0 0.0
    %479 = vmatpush2.msra.mxu0 0.0
    %480 = vmatprep.subr.mxu0 0.0
    %481 = vmatpush2.msra.mxu0 0.0
    %482 = vmatprep.subr.mxu0 0.0
    %483 = vmatpush2.msra.mxu0 0.0
    %484 = vmatprep.subr.mxu0 0.0
    %485 = vmatpush2.msra.mxu0 0.0
    %486 = vmatprep.subr.mxu0 0.0
    %487 = vmatpush2.msra.mxu0 0.0
    %488 = vmatprep.subr.mxu0 0.0
    %489 = vmatpush2.msra.mxu0 0.0
    %490 = vmatprep.subr.mxu0 0.0
    %491 = vmatpush2.msra.mxu0 0.0
    %492 = vmatprep.subr.mxu0 0.0
    %493 = vmatpush2.msra.mxu0 0.0
    %494 = vmatprep.mubr.f32.mxu0 0.0
    %495 = vmatmul.mubr.f32.gmra.mxu0 %v421
    %v496 = vpop.f32.mrf.mxu0
    %v497 = vadd.f32 0.0, %v496
    %v498 = vpop.f32.mrf.mxu0
    %499 = vmatprep.mubr.f32.mxu0 0.0
    %500 = vmatmul.mubr.f32.gmra.mxu0 %v424
    %v501 = vpop.f32.mrf.mxu0
    %v502 = vadd.f32 0.0, %v501
    %v503 = vpop.f32.mrf.mxu0
    %504 = vdwg.mxu0
    %vm505 = vcmask 31744
    %v506 = vsel %vm505, %v417, 0
    %v508 = vsel %vm505, %v418, 0
    %vm510 = vcmask 1043456
    %v512 = vsel %vm510, %v54, 0
    %514 = vmatprep.subr.mxu0 0.0
    %515 = vmatpush1.msra.mxu0 0.0
    %516 = vmatprep.subr.mxu0 0.0
    %517 = vmatpush1.msra.mxu0 0.0
    %518 = vmatprep.subr.mxu0 0.0
    %519 = vmatpush1.msra.mxu0 0.0
    %520 = vmatprep.subr.mxu0 0.0
    %521 = vmatpush1.msra.mxu0 0.0
    %522 = vmatprep.subr.mxu0 0.0
    %523 = vmatpush1.msra.mxu0 0.0
    %524 = vmatprep.subr.mxu0 0.0
    %525 = vmatpush1.msra.mxu0 0.0
    %526 = vmatprep.subr.mxu0 0.0
    %527 = vmatpush1.msra.mxu0 0.0
    %528 = vmatprep.subr.mxu0 0.0
    %529 = vmatpush1.msra.mxu0 0.0
    %530 = vmatprep.subr.mxu0 0.0
    %531 = vmatpush1.msra.mxu0 0.0
    %532 = vmatprep.subr.mxu0 0.0
    %533 = vmatpush1.msra.mxu0 0.0
    %534 = vmatprep.subr.mxu0 0.0
    %535 = vmatpush1.msra.mxu0 0.0
    %536 = vmatprep.subr.mxu0 0.0
    %537 = vmatpush1.msra.mxu0 0.0
    %538 = vmatprep.subr.mxu0 0.0
    %539 = vmatpush1.msra.mxu0 0.0
    %540 = vmatprep.subr.mxu0 0.0
    %541 = vmatpush1.msra.mxu0 0.0
    %542 = vmatprep.subr.mxu0 0.0
    %543 = vmatpush1.msra.mxu0 0.0
    %544 = vmatprep.subr.mxu0 0.0
    %545 = vmatpush1.msra.mxu0 %v512
    %546 = vmatprep.subr.mxu0 0.0
    %547 = vmatpush2.msra.mxu0 0.0
    %548 = vmatprep.subr.mxu0 0.0
    %549 = vmatpush2.msra.mxu0 0.0
    %550 = vmatprep.subr.mxu0 0.0
    %551 = vmatpush2.msra.mxu0 0.0
    %552 = vmatprep.subr.mxu0 0.0
    %553 = vmatpush2.msra.mxu0 0.0
    %554 = vmatprep.subr.mxu0 0.0
    %555 = vmatpush2.msra.mxu0 0.0
    %556 = vmatprep.subr.mxu0 0.0
    %557 = vmatpush2.msra.mxu0 0.0
    %558 = vmatprep.subr.mxu0 0.0
    %559 = vmatpush2.msra.mxu0 0.0
    %560 = vmatprep.subr.mxu0 0.0
    %561 = vmatpush2.msra.mxu0 0.0
    %562 = vmatprep.subr.mxu0 0.0
    %563 = vmatpush2.msra.mxu0 0.0
    %564 = vmatprep.subr.mxu0 0.0
    %565 = vmatpush2.msra.mxu0 0.0
    %566 = vmatprep.subr.mxu0 0.0
    %567 = vmatpush2.msra.mxu0 0.0
    %568 = vmatprep.subr.mxu0 0.0
    %569 = vmatpush2.msra.mxu0 0.0
    %570 = vmatprep.subr.mxu0 0.0
    %571 = vmatpush2.msra.mxu0 0.0
    %572 = vmatprep.subr.mxu0 0.0
    %573 = vmatpush2.msra.mxu0 0.0
    %574 = vmatprep.subr.mxu0 0.0
    %575 = vmatpush2.msra.mxu0 0.0
    %576 = vmatprep.subr.mxu0 0.0
    %577 = vmatpush2.msra.mxu0 0.0
    %578 = vmatprep.mubr.f32.mxu0 0.0
    %579 = vmatmul.mubr.f32.gmra.mxu0 %v506
    %v580 = vpop.f32.mrf.mxu0
    %v581 = vadd.f32 0.0, %v580
    %v582 = vpop.f32.mrf.mxu0
    %583 = vmatprep.mubr.f32.mxu0 0.0
    %584 = vmatmul.mubr.f32.gmra.mxu0 %v508
    %v585 = vpop.f32.mrf.mxu0
    %v586 = vadd.f32 0.0, %v585
    %v587 = vpop.f32.mrf.mxu0
    %588 = vdwg.mxu0
    %v589 = vmul.f32 %v147, %v147
    %v590 = vmul.f32 %v152, %v152
    %591 = vadd.xlane.f32.xlu0 %v589
    %v592 = vpop.xlane.xlu0 %591
    %593 = vadd.xlane.f32.xlu0 %v590
    %v594 = vpop.xlane.xlu0 %593
    %v595 = vmax.f32 %v592, 1e-24
    %v596 = vmax.f32 %v594, 1e-24
    %v597 = vrsqrt.pop %v595
    %v598 = vrsqrt.pop %v596
    %v599 = vmul.f32 %v147, %v597
    %v600 = vmul.f32 %v152, %v598
    %v601 = vmul.f32 %v599, %v320
    %v602 = vmul.f32 %v600, %v325
    %v603 = vmul.f32 %v497, %v581
    %v604 = vmul.f32 %v502, %v586
    %v605 = vadd.f32 %v601, %v603
    %v606 = vadd.f32 %v602, %v604
    %v607 = vmul.f32 %v240, %v240
    %v608 = vmul.f32 %v245, %v245
    %609 = vadd.xlane.f32.xlu0 %v607
    %v610 = vpop.xlane.xlu0 %609
    %611 = vadd.xlane.f32.xlu0 %v608
    %v612 = vpop.xlane.xlu0 %611
    %v613 = vmax.f32 %v610, 1e-24
    %v614 = vmax.f32 %v612, 1e-24
    %v615 = vrsqrt.pop %v613
    %v616 = vrsqrt.pop %v614
    %v617 = vmul.f32 %v240, %v615
    %v618 = vmul.f32 %v245, %v616
    %v619 = vmul.f32 %v617, %v399
    %v620 = vmul.f32 %v618, %v404
    %v621 = vsub.f32 %v605, %v619
    %v622 = vsub.f32 %v606, %v620
    %v623 = vand.u32 2147483647, %v621
    %v624 = vand.u32 2147483647, %v622
    %625 = vadd.xlane.f32.xlu0 %v623
    %v626 = vpop.xlane.xlu0 %625
    %627 = vadd.xlane.f32.xlu0 %v624
    %v628 = vpop.xlane.xlu0 %627
    %v629 = vsub.f32 %v626, %v628
    %v630 = vadd.f32 %v629, 1.0
    %v631 = vmax.f32 %v630, 0.0
    %vm632 = vcmp.eq.s32.totalorder %v56, 0
    %vm633 = vcmp.eq.s32.totalorder %v56, 1
    %vm634 = vcmp.eq.s32.totalorder %v56, 2
    %v635 = vsel %vm634, %v631, 0.0
    %v636 = vsel %vm633, %v628, %v635
    %v637 = vsel %vm632, %v626, %v636
    %638 = vst [vmem:[%s5] sm:$0xff] %v637
    // Predicated region
    $region30: #{transw_forward.1} parent=1 // pred_check
      _
    $region31: #{transw_forward.1} parent=1 // pred_check_branch
      %640 = sbr.rel (0) target = $region33
    $region32: #{transw_forward.1} parent=1 // pred_region
      _
    $region33: #{transw_forward.1} parent=1 // pred_fallthru
      _
    // Predicated region
    $region34: #{transw_forward.1} parent=1 // pred_check
      _
    $region35: #{transw_forward.1} parent=1 // pred_check_branch
      %642 = sbr.rel (0) target = $region37
    $region36: #{transw_forward.1} parent=1 // pred_region
      _
    $region37: #{transw_forward.1} parent=1 // pred_fallthru
      _
    %643 = vsyncpa [#allocation3], 1
    %644 = vsyncpa [#allocation5], 1

</llo_original>
